<compile_context>
chip_gen: v7x
topology: tpu7x:2x2x1
jax: 0.10.0
libtpu: 0.0.40
codegen_flags: <defaults>
</compile_context>

<pallas_src>
import jax
import jax.numpy as jnp
from jax import lax
from jax.experimental import pallas as pl
from jax.experimental.pallas import tpu as pltpu


def factorized_reduce_kernel(x_ref, w_ref, g_ref, b_ref, o_ref):
    # x_ref: (Bt, Cin, S)  stride-2-subsampled input (pre-ReLU), f32
    # w_ref: (Cout, Cin)   fused [W1; W2] 1x1-conv weights, f32
    # g_ref: (Cout, 1)     GroupNorm affine scale
    # b_ref: (Cout, 1)     GroupNorm affine shift
    # o_ref: (Bt, Cout, S)
    bt, cin, s = x_ref.shape
    cout = w_ref.shape[0]
    use_mxu = cin >= 16  # static (trace-time) decision

    w = w_ref[...]
    g = g_ref[...]
    b = b_ref[...]
    w_mx = w.astype(jnp.bfloat16) if use_mxu else None
    inv_n = jnp.float32(1.0 / (cout * s))

    for i in range(bt):  # small static batch tile, unrolled
        xs = jnp.maximum(x_ref[i], 0.0)  # ReLU, (Cin, S), f32
        if use_mxu:
            # bf16 MXU operands, f32 accumulation.
            z = jnp.dot(w_mx, xs.astype(jnp.bfloat16),
                        preferred_element_type=jnp.float32)
        else:
            # Tiny-Cin path: unrolled broadcast-FMA on the VPU (skip MXU).
            z = w[:, 0:1] * xs[0:1, :]
            for c in range(1, cin):
                z = z + w[:, c:c + 1] * xs[c:c + 1, :]
        # GroupNorm with one group == per-sample norm over (Cout, S);
        # one-pass statistics (sum and sum of squares), kept in f32.
        s1 = jnp.sum(z)
        s2 = jnp.sum(z * z)
        mean = s1 * inv_n
        var = s2 * inv_n - mean * mean
        zn = (z - mean) * lax.rsqrt(var + 1e-5)
        o_ref[i] = (zn * g + b).astype(o_ref.dtype)


def factorized_reduce(x_nchw, w1, w2, gamma, beta, *, batch_tile=None):
    """x_nchw: (N, Cin, H, W); w1, w2: (Cout//2, Cin, 1, 1); gamma, beta: (Cout,)."""
    N, Cin, H, W = x_nchw.shape
    Chalf = w1.shape[0]
    Cout = 2 * Chalf
    Ho, Wo = (H + 1) // 2, (W + 1) // 2  # Conv2d(kernel=1, stride=2) output size
    S = Ho * Wo

    # Stride-2 subsample once in the wrapper (ReLU commutes with it, so ReLU
    # stays in-kernel). Layout stays NCHW: channels -> sublanes, spatial -> lanes.
    x_sub = x_nchw[:, :, ::2, ::2].reshape(N, Cin, S).astype(jnp.float32)

    # Fused conv1 | conv2 weight, applied as z = W_fused @ x; rows [0, Cout/2)
    # are conv1's output channels, the rest conv2's (== torch.cat on channels).
    # NOTE: this module applies BOTH convs to the same input (per the spec),
    # unlike canonical DARTS FactorizedReduce which shifts conv2's input.
    w_fused = jnp.concatenate([w1, w2], axis=0).reshape(Cout, Cin).astype(jnp.float32)
    g2d = gamma.reshape(Cout, 1).astype(jnp.float32)
    b2d = beta.reshape(Cout, 1).astype(jnp.float32)

    if batch_tile is None:
        batch_tile = max(1, min(N, 4))
    n_pad = pl.cdiv(N, batch_tile) * batch_tile
    if n_pad != N:
        x_sub = jnp.pad(x_sub, ((0, n_pad - N), (0, 0), (0, 0)))

    out = pl.pallas_call(
        factorized_reduce_kernel,
        out_shape=jax.ShapeDtypeStruct((n_pad, Cout, S), jnp.float32),
        grid_spec=pl.GridSpec(
            grid=(n_pad // batch_tile,),
            in_specs=[
                pl.BlockSpec((batch_tile, Cin, S), lambda n: (n, 0, 0)),
                pl.BlockSpec((Cout, Cin), lambda n: (0, 0)),
                pl.BlockSpec((Cout, 1), lambda n: (0, 0)),
                pl.BlockSpec((Cout, 1), lambda n: (0, 0)),
            ],
            out_specs=pl.BlockSpec((batch_tile, Cout, S), lambda n: (n, 0, 0)),
        ),
        compiler_params=pltpu.CompilerParams(
            dimension_semantics=("parallel",)),
    )(x_sub, w_fused, g2d, b2d)

    # (N, Cout, Ho*Wo) is already NCHW-ordered; final reshape is free.
    return out[:N].reshape(N, Cout, Ho, Wo)


def factorized_reduce_ref(x_nchw, w1, w2, gamma, beta):
    """Pure-JAX f32 reference mirroring the PyTorch forward (NCHW)."""
    Chalf, Cin = w1.shape[0], w1.shape[1]
    hi = lax.Precision.HIGHEST
    y = jnp.maximum(x_nchw, 0.0)
    ys = y[:, :, ::2, ::2]  # stride-2, kernel-1
    z1 = jnp.einsum("nchw,oc->nohw", ys, w1.reshape(Chalf, Cin), precision=hi)
    z2 = jnp.einsum("nchw,oc->nohw", ys, w2.reshape(Chalf, Cin), precision=hi)
    z = jnp.concatenate([z1, z2], axis=1)
    mean = z.mean(axis=(1, 2, 3), keepdims=True)
    var = jnp.square(z - mean).mean(axis=(1, 2, 3), keepdims=True)
    zn = (z - mean) / jnp.sqrt(var + 1e-5)
    return zn * gamma[None, :, None, None] + beta[None, :, None, None]


if __name__ == "__main__":
    def run_case(N, Cin, Cout, H, W, atol):
        key = jax.random.PRNGKey(0)
        kx, k1, k2, kg, kb = jax.random.split(key, 5)
        x = jax.random.normal(kx, (N, Cin, H, W), dtype=jnp.float32)
        w1 = 0.3 * jax.random.normal(k1, (Cout // 2, Cin, 1, 1), dtype=jnp.float32)
        w2 = 0.3 * jax.random.normal(k2, (Cout // 2, Cin, 1, 1), dtype=jnp.float32)
        gamma = 1.0 + 0.1 * jax.random.normal(kg, (Cout,), dtype=jnp.float32)
        beta = 0.1 * jax.random.normal(kb, (Cout,), dtype=jnp.float32)

        out = jax.block_until_ready(factorized_reduce(x, w1, w2, gamma, beta))
        ref = jax.block_until_ready(factorized_reduce_ref(x, w1, w2, gamma, beta))

        assert out.shape == (N, Cout, (H + 1) // 2, (W + 1) // 2), out.shape
        err = float(jnp.max(jnp.abs(out - ref)))
        assert err <= atol, f"max abs err {err} > {atol}"

    # Module-spec config (tiny channels): exercises the f32 VPU conv path.
    run_case(N=2, Cin=4, Cout=8, H=16, W=16, atol=1e-3)
    # Wider channels: exercises the bf16-operand MXU path (f32 accum/stats),
    # hence the looser tolerance against the f32 reference.
    run_case(N=2, Cin=32, Cout=32, H=16, W=16, atol=5e-2)

    print("KERNEL_OK")
</pallas_src>

<mosaic_0001>
module attributes {stable_mosaic.version = 11 : i64} {
  func.func @factorized_reduce_kernel(%arg0: i32, %arg1: memref<2x4x64xf32, #tpu.memory_space<vmem>>, %arg2: memref<8x4xf32, #tpu.memory_space<vmem>>, %arg3: memref<8x1xf32, #tpu.memory_space<vmem>>, %arg4: memref<8x1xf32, #tpu.memory_space<vmem>>, %arg5: memref<2x8x64xf32, #tpu.memory_space<vmem>>) attributes {dimension_semantics = [#tpu.dimension_semantics<parallel>], iteration_bounds = array<i64: 1>, scalar_prefetch = 0 : i64, scratch_operands = 0 : i64, tpu.core_type = #tpu.core_type<tc>, window_params = [{transform_indices = @transform_0, window_bounds = array<i64: 2, 4, 64>}, {pipeline_mode = #tpu.pipeline_mode<synchronous>, transform_indices = @transform_1, window_bounds = array<i64: 8, 4>}, {pipeline_mode = #tpu.pipeline_mode<synchronous>, transform_indices = @transform_2, window_bounds = array<i64: 8, 1>}, {pipeline_mode = #tpu.pipeline_mode<synchronous>, transform_indices = @transform_3, window_bounds = array<i64: 8, 1>}, {transform_indices = @transform_4, window_bounds = array<i64: 2, 8, 64>}]} {
    %c0 = arith.constant 0 : index
    %c0_0 = arith.constant 0 : index
    %0 = vector.load %arg2[%c0, %c0_0] : memref<8x4xf32, #tpu.memory_space<vmem>>, vector<8x4xf32>
    %c0_1 = arith.constant 0 : index
    %c0_2 = arith.constant 0 : index
    %1 = vector.load %arg3[%c0_1, %c0_2] : memref<8x1xf32, #tpu.memory_space<vmem>>, vector<8x1xf32>
    %c0_3 = arith.constant 0 : index
    %c0_4 = arith.constant 0 : index
    %2 = vector.load %arg4[%c0_3, %c0_4] : memref<8x1xf32, #tpu.memory_space<vmem>>, vector<8x1xf32>
    %c0_5 = arith.constant 0 : index
    %c0_6 = arith.constant 0 : index
    %c0_7 = arith.constant 0 : index
    %3 = vector.load %arg1[%c0_5, %c0_6, %c0_7] : memref<2x4x64xf32, #tpu.memory_space<vmem>>, vector<1x4x64xf32>
    %4 = vector.shape_cast %3 : vector<1x4x64xf32> to vector<4x64xf32>
    %cst = arith.constant 0.000000e+00 : f32
    %5 = vector.broadcast %cst : f32 to vector<4x64xf32>
    %6 = arith.maximumf %4, %5 : vector<4x64xf32>
    %7 = vector.extract_strided_slice %0 {offsets = [0, 0], sizes = [8, 1], strides = [1, 1]} : vector<8x4xf32> to vector<8x1xf32>
    %8 = vector.extract_strided_slice %6 {offsets = [0, 0], sizes = [1, 64], strides = [1, 1]} : vector<4x64xf32> to vector<1x64xf32>
    %9 = vector.broadcast %7 : vector<8x1xf32> to vector<8x64xf32>
    %10 = vector.broadcast %8 : vector<1x64xf32> to vector<8x64xf32>
    %11 = arith.mulf %9, %10 : vector<8x64xf32>
    %12 = vector.extract_strided_slice %0 {offsets = [0, 1], sizes = [8, 1], strides = [1, 1]} : vector<8x4xf32> to vector<8x1xf32>
    %13 = vector.extract_strided_slice %6 {offsets = [1, 0], sizes = [1, 64], strides = [1, 1]} : vector<4x64xf32> to vector<1x64xf32>
    %14 = vector.broadcast %12 : vector<8x1xf32> to vector<8x64xf32>
    %15 = vector.broadcast %13 : vector<1x64xf32> to vector<8x64xf32>
    %16 = arith.mulf %14, %15 : vector<8x64xf32>
    %17 = arith.addf %11, %16 : vector<8x64xf32>
    %18 = vector.extract_strided_slice %0 {offsets = [0, 2], sizes = [8, 1], strides = [1, 1]} : vector<8x4xf32> to vector<8x1xf32>
    %19 = vector.extract_strided_slice %6 {offsets = [2, 0], sizes = [1, 64], strides = [1, 1]} : vector<4x64xf32> to vector<1x64xf32>
    %20 = vector.broadcast %18 : vector<8x1xf32> to vector<8x64xf32>
    %21 = vector.broadcast %19 : vector<1x64xf32> to vector<8x64xf32>
    %22 = arith.mulf %20, %21 : vector<8x64xf32>
    %23 = arith.addf %17, %22 : vector<8x64xf32>
    %24 = vector.extract_strided_slice %0 {offsets = [0, 3], sizes = [8, 1], strides = [1, 1]} : vector<8x4xf32> to vector<8x1xf32>
    %25 = vector.extract_strided_slice %6 {offsets = [3, 0], sizes = [1, 64], strides = [1, 1]} : vector<4x64xf32> to vector<1x64xf32>
    %26 = vector.broadcast %24 : vector<8x1xf32> to vector<8x64xf32>
    %27 = vector.broadcast %25 : vector<1x64xf32> to vector<8x64xf32>
    %28 = arith.mulf %26, %27 : vector<8x64xf32>
    %29 = arith.addf %23, %28 : vector<8x64xf32>
    %30 = vector.shape_cast %29 : vector<8x64xf32> to vector<1x8x64xf32>
    %cst_8 = arith.constant dense<0.000000e+00> : vector<1xf32>
    %31 = vector.multi_reduction <add>, %30, %cst_8 [1, 2] : vector<1x8x64xf32> to vector<1xf32>
    %32 = vector.shape_cast %31 : vector<1xf32> to vector<1x1x1xf32>
    %33 = vector.extract %32[0, 0, 0] : f32 from vector<1x1x1xf32>
    %34 = arith.mulf %29, %29 : vector<8x64xf32>
    %35 = vector.shape_cast %34 : vector<8x64xf32> to vector<1x8x64xf32>
    %cst_9 = arith.constant dense<0.000000e+00> : vector<1xf32>
    %36 = vector.multi_reduction <add>, %35, %cst_9 [1, 2] : vector<1x8x64xf32> to vector<1xf32>
    %37 = vector.shape_cast %36 : vector<1xf32> to vector<1x1x1xf32>
    %38 = vector.extract %37[0, 0, 0] : f32 from vector<1x1x1xf32>
    %cst_10 = arith.constant 0.001953125 : f32
    %39 = arith.mulf %33, %cst_10 : f32
    %cst_11 = arith.constant 0.001953125 : f32
    %40 = arith.mulf %38, %cst_11 : f32
    %41 = arith.mulf %39, %39 : f32
    %42 = arith.subf %40, %41 : f32
    %43 = vector.broadcast %39 : f32 to vector<8x64xf32>
    %44 = arith.subf %29, %43 : vector<8x64xf32>
    %cst_12 = arith.constant 9.99999974E-6 : f32
    %45 = arith.addf %42, %cst_12 : f32
    %46 = math.rsqrt %45 : f32
    %47 = vector.broadcast %46 : f32 to vector<8x64xf32>
    %48 = arith.mulf %44, %47 : vector<8x64xf32>
    %49 = vector.broadcast %1 : vector<8x1xf32> to vector<8x64xf32>
    %50 = arith.mulf %48, %49 : vector<8x64xf32>
    %51 = vector.broadcast %2 : vector<8x1xf32> to vector<8x64xf32>
    %52 = arith.addf %50, %51 : vector<8x64xf32>
    %c0_13 = arith.constant 0 : index
    %c0_14 = arith.constant 0 : index
    %c0_15 = arith.constant 0 : index
    %53 = vector.load %arg5[%c0_13, %c0_14, %c0_15] : memref<2x8x64xf32, #tpu.memory_space<vmem>>, vector<1x8x64xf32>
    %54 = vector.shape_cast %53 : vector<1x8x64xf32> to vector<8x64xf32>
    %55 = vector.shape_cast %52 : vector<8x64xf32> to vector<1x8x64xf32>
    tpu.vector_store %arg5[%c0_13, %c0_14, %c0_15], %55 {strides = array<i32>} : memref<2x8x64xf32, #tpu.memory_space<vmem>>, vector<1x8x64xf32>,
    %c1 = arith.constant 1 : index
    %c0_16 = arith.constant 0 : index
    %c0_17 = arith.constant 0 : index
    %56 = vector.load %arg1[%c1, %c0_16, %c0_17] : memref<2x4x64xf32, #tpu.memory_space<vmem>>, vector<1x4x64xf32>
    %57 = vector.shape_cast %56 : vector<1x4x64xf32> to vector<4x64xf32>
    %cst_18 = arith.constant 0.000000e+00 : f32
    %58 = vector.broadcast %cst_18 : f32 to vector<4x64xf32>
    %59 = arith.maximumf %57, %58 : vector<4x64xf32>
    %60 = vector.extract_strided_slice %0 {offsets = [0, 0], sizes = [8, 1], strides = [1, 1]} : vector<8x4xf32> to vector<8x1xf32>
    %61 = vector.extract_strided_slice %59 {offsets = [0, 0], sizes = [1, 64], strides = [1, 1]} : vector<4x64xf32> to vector<1x64xf32>
    %62 = vector.broadcast %60 : vector<8x1xf32> to vector<8x64xf32>
    %63 = vector.broadcast %61 : vector<1x64xf32> to vector<8x64xf32>
    %64 = arith.mulf %62, %63 : vector<8x64xf32>
    %65 = vector.extract_strided_slice %0 {offsets = [0, 1], sizes = [8, 1], strides = [1, 1]} : vector<8x4xf32> to vector<8x1xf32>
    %66 = vector.extract_strided_slice %59 {offsets = [1, 0], sizes = [1, 64], strides = [1, 1]} : vector<4x64xf32> to vector<1x64xf32>
    %67 = vector.broadcast %65 : vector<8x1xf32> to vector<8x64xf32>
    %68 = vector.broadcast %66 : vector<1x64xf32> to vector<8x64xf32>
    %69 = arith.mulf %67, %68 : vector<8x64xf32>
    %70 = arith.addf %64, %69 : vector<8x64xf32>
    %71 = vector.extract_strided_slice %0 {offsets = [0, 2], sizes = [8, 1], strides = [1, 1]} : vector<8x4xf32> to vector<8x1xf32>
    %72 = vector.extract_strided_slice %59 {offsets = [2, 0], sizes = [1, 64], strides = [1, 1]} : vector<4x64xf32> to vector<1x64xf32>
    %73 = vector.broadcast %71 : vector<8x1xf32> to vector<8x64xf32>
    %74 = vector.broadcast %72 : vector<1x64xf32> to vector<8x64xf32>
    %75 = arith.mulf %73, %74 : vector<8x64xf32>
    %76 = arith.addf %70, %75 : vector<8x64xf32>
    %77 = vector.extract_strided_slice %0 {offsets = [0, 3], sizes = [8, 1], strides = [1, 1]} : vector<8x4xf32> to vector<8x1xf32>
    %78 = vector.extract_strided_slice %59 {offsets = [3, 0], sizes = [1, 64], strides = [1, 1]} : vector<4x64xf32> to vector<1x64xf32>
    %79 = vector.broadcast %77 : vector<8x1xf32> to vector<8x64xf32>
    %80 = vector.broadcast %78 : vector<1x64xf32> to vector<8x64xf32>
    %81 = arith.mulf %79, %80 : vector<8x64xf32>
    %82 = arith.addf %76, %81 : vector<8x64xf32>
    %83 = vector.shape_cast %82 : vector<8x64xf32> to vector<1x8x64xf32>
    %cst_19 = arith.constant dense<0.000000e+00> : vector<1xf32>
    %84 = vector.multi_reduction <add>, %83, %cst_19 [1, 2] : vector<1x8x64xf32> to vector<1xf32>
    %85 = vector.shape_cast %84 : vector<1xf32> to vector<1x1x1xf32>
    %86 = vector.extract %85[0, 0, 0] : f32 from vector<1x1x1xf32>
    %87 = arith.mulf %82, %82 : vector<8x64xf32>
    %88 = vector.shape_cast %87 : vector<8x64xf32> to vector<1x8x64xf32>
    %cst_20 = arith.constant dense<0.000000e+00> : vector<1xf32>
    %89 = vector.multi_reduction <add>, %88, %cst_20 [1, 2] : vector<1x8x64xf32> to vector<1xf32>
    %90 = vector.shape_cast %89 : vector<1xf32> to vector<1x1x1xf32>
    %91 = vector.extract %90[0, 0, 0] : f32 from vector<1x1x1xf32>
    %cst_21 = arith.constant 0.001953125 : f32
    %92 = arith.mulf %86, %cst_21 : f32
    %cst_22 = arith.constant 0.001953125 : f32
    %93 = arith.mulf %91, %cst_22 : f32
    %94 = arith.mulf %92, %92 : f32
    %95 = arith.subf %93, %94 : f32
    %96 = vector.broadcast %92 : f32 to vector<8x64xf32>
    %97 = arith.subf %82, %96 : vector<8x64xf32>
    %cst_23 = arith.constant 9.99999974E-6 : f32
    %98 = arith.addf %95, %cst_23 : f32
    %99 = math.rsqrt %98 : f32
    %100 = vector.broadcast %99 : f32 to vector<8x64xf32>
    %101 = arith.mulf %97, %100 : vector<8x64xf32>
    %102 = vector.broadcast %1 : vector<8x1xf32> to vector<8x64xf32>
    %103 = arith.mulf %101, %102 : vector<8x64xf32>
    %104 = vector.broadcast %2 : vector<8x1xf32> to vector<8x64xf32>
    %105 = arith.addf %103, %104 : vector<8x64xf32>
    %c1_24 = arith.constant 1 : index
    %c0_25 = arith.constant 0 : index
    %c0_26 = arith.constant 0 : index
    %106 = vector.load %arg5[%c1_24, %c0_25, %c0_26] : memref<2x8x64xf32, #tpu.memory_space<vmem>>, vector<1x8x64xf32>
    %107 = vector.shape_cast %106 : vector<1x8x64xf32> to vector<8x64xf32>
    %108 = vector.shape_cast %105 : vector<8x64xf32> to vector<1x8x64xf32>
    tpu.vector_store %arg5[%c1_24, %c0_25, %c0_26], %108 {strides = array<i32>} : memref<2x8x64xf32, #tpu.memory_space<vmem>>, vector<1x8x64xf32>,
    return
  }
  func.func @transform_0(%arg0: i32) -> (i32, i32, i32) {
    %c0_i32 = arith.constant 0 : i32
    %c0_i32_0 = arith.constant 0 : i32
    %c0_i32_1 = arith.constant 0 : i32
    return %arg0, %c0_i32, %c0_i32_0 : i32, i32, i32
  }
  func.func @transform_1(%arg0: i32) -> (i32, i32) {
    %c0_i32 = arith.constant 0 : i32
    %c0_i32_0 = arith.constant 0 : i32
    %c0_i32_1 = arith.constant 0 : i32
    return %c0_i32, %c0_i32_0 : i32, i32
  }
  func.func @transform_2(%arg0: i32) -> (i32, i32) {
    %c0_i32 = arith.constant 0 : i32
    %c0_i32_0 = arith.constant 0 : i32
    %c0_i32_1 = arith.constant 0 : i32
    return %c0_i32, %c0_i32_0 : i32, i32
  }
  func.func @transform_3(%arg0: i32) -> (i32, i32) {
    %c0_i32 = arith.constant 0 : i32
    %c0_i32_0 = arith.constant 0 : i32
    %c0_i32_1 = arith.constant 0 : i32
    return %c0_i32, %c0_i32_0 : i32, i32
  }
  func.func @transform_4(%arg0: i32) -> (i32, i32, i32) {
    %c0_i32 = arith.constant 0 : i32
    %c0_i32_0 = arith.constant 0 : i32
    %c0_i32_1 = arith.constant 0 : i32
    return %arg0, %c0_i32, %c0_i32_0 : i32, i32, i32
  }
}

</mosaic_0001>

<llo_original>
// kernel: tpu_custom_call.1
$region0: #{tpu_custom_call.1}
  #allocation0 [shape = 'u32[]', space=smem, size = 0x4, offset = 0x4, fixed_abs, tag = 'smem constant byte address 0x4 - core index']
  #allocation1 [shape = 'u32[144,128]{1,0:T(1,128)}', space=vmem, size = 0x12000, scoped, tag = 'internal scratch']
  %s0 = inlined_call_operand.vmem [shape: f32[2,4,64], index: 0, kind: input, shape index: {}]
  %s1 = inlined_call_operand.vmem [shape: f32[8,4], index: 1, kind: input, shape index: {}]
  %s2 = inlined_call_operand.vmem [shape: f32[8,1], index: 2, kind: input, shape index: {}]
  %s3 = inlined_call_operand.vmem [shape: f32[8,1], index: 3, kind: input, shape index: {}]
  %s4 = inlined_call_operand.hbm [shape: f32[2,8,64], index: 4, kind: output, shape index: {}]
  %s5 = sld [smem:[#allocation0]]
  $region26: #{tpu_custom_call.1} parent=0
    _
  %s7 = ssub.s32 1, %s5
  %s8 = scalar_select 0, %s7, %s5
  $region1: #{tpu_custom_call.1} parent=0
    #allocation2 [shape = 'u8[8192]{0}', space=vmem, size = 0x2000, scoped, tag = 'output window, operand 0, single buffered']
    #allocation3 [shape = 's32[1]{0}', space=sflag, size = 0x4, scoped, tag = 'scoped memory for tpu_custom_call.1']
    %9 = vsyncpa [#allocation3], 0
    // Predicated region
    $region2: #{tpu_custom_call.1} parent=1 // pred_check
      _
    $region3: #{tpu_custom_call.1} parent=1 // pred_check_branch
      %11 = sbr.rel (0) target = $region5
    $region4: #{tpu_custom_call.1} parent=1 // pred_region
      _
    $region5: #{tpu_custom_call.1} parent=1 // pred_fallthru
      _
    // Predicated region
    $region6: #{tpu_custom_call.1} parent=1 // pred_check
      _
    $region7: #{tpu_custom_call.1} parent=1 // pred_check_branch
      %13 = sbr.rel (0) target = $region9
    $region8: #{tpu_custom_call.1} parent=1 // pred_region
      _
    $region9: #{tpu_custom_call.1} parent=1 // pred_fallthru
      _
    // Predicated region
    $region10: #{tpu_custom_call.1} parent=1 // pred_check
      _
    $region11: #{tpu_custom_call.1} parent=1 // pred_check_branch
      %15 = sbr.rel (0) target = $region13
    $region12: #{tpu_custom_call.1} parent=1 // pred_region
      _
    $region13: #{tpu_custom_call.1} parent=1 // pred_fallthru
      _
    // Predicated region
    $region14: #{tpu_custom_call.1} parent=1 // pred_check
      _
    $region15: #{tpu_custom_call.1} parent=1 // pred_check_branch
      %17 = sbr.rel (0) target = $region17
    $region16: #{tpu_custom_call.1} parent=1 // pred_region
      _
    $region17: #{tpu_custom_call.1} parent=1 // pred_fallthru
      _
    %v18 = vld [vmem:[%s1] sm:$0xff]
    %v19 = vld [vmem:[%s2] sm:$0xff]
    %v20 = vld [vmem:[%s3] sm:$0xff]
    %v21 = vld [vmem:[%s0] sm:$0xf]
    %v22 = vmax.f32 %v21, 0.0
    %24 = vset.pattern.permute.xlu0 0
    %25 = vperm.xlu0 %24, %v18
    %v26 = vpop.permute.xlu0 %25
    %v28 = vlaneseq
    %v29 = vshrl.u32 %v28, 7
    %v30 = vsub.s32 0, %v29
    %v31 = vrot.slane %v22, %v30
    %v32 = vmul.f32 %v26, %v31
    %33 = vset.pattern.permute.xlu0 1
    %34 = vperm.xlu0 %33, %v18
    %v35 = vpop.permute.xlu0 %34
    %v37 = vlaneseq
    %v38 = vshrl.u32 %v37, 7
    %v39 = vsub.s32 1, %v38
    %v40 = vrot.slane %v22, %v39
    %v41 = vmul.f32 %v35, %v40
    %v42 = vadd.f32 %v32, %v41
    %43 = vset.pattern.permute.xlu0 2
    %44 = vperm.xlu0 %43, %v18
    %v45 = vpop.permute.xlu0 %44
    %v47 = vlaneseq
    %v48 = vshrl.u32 %v47, 7
    %v49 = vsub.s32 2, %v48
    %v50 = vrot.slane %v22, %v49
    %v51 = vmul.f32 %v45, %v50
    %v52 = vadd.f32 %v42, %v51
    %53 = vset.pattern.permute.xlu0 3
    %54 = vperm.xlu0 %53, %v18
    %v55 = vpop.permute.xlu0 %54
    %v57 = vlaneseq
    %v58 = vshrl.u32 %v57, 7
    %v59 = vsub.s32 3, %v58
    %v60 = vrot.slane %v22, %v59
    %v61 = vmul.f32 %v55, %v60
    %v62 = vadd.f32 %v52, %v61
    %vm63 = vcmask 523264
    %v64 = vsel %vm63, %v62, 0.0
    %65 = vadd.xlane.f32.xlu0 %v64
    %v66 = vpop.xlane.xlu0 %65
    %v67 = vrot.slane %v66, 4
    %v68 = vadd.f32 %v66, %v67
    %v69 = vrot.slane %v68, 2
    %v70 = vadd.f32 %v68, %v69
    %v71 = vrot.slane %v70, 1
    %v72 = vadd.f32 %v70, %v71
    %s73 = vtos %v72
    %v74 = vmul.f32 %v62, %v62
    %v75 = vsel %vm63, %v74, 0.0
    %76 = vadd.xlane.f32.xlu0 %v75
    %v77 = vpop.xlane.xlu0 %76
    %v78 = vrot.slane %v77, 4
    %v79 = vadd.f32 %v77, %v78
    %v80 = vrot.slane %v79, 2
    %v81 = vadd.f32 %v79, %v80
    %v82 = vrot.slane %v81, 1
    %v83 = vadd.f32 %v81, %v82
    %s84 = vtos %v83
    %s85 = smul.f32 %s73, 0.001953125
    %s86 = smul.f32 %s84, 0.001953125
    %s87 = smul.f32 %s85, %s85
    %s88 = ssub.f32 %s86, %s87
    %v89 = vstv %s85
    %v90 = vsub.f32 %v62, %v89
    %s91 = sadd.f32 %s88, 1e-05
    %v92 = vstv %s91
    %v93 = vrsqrt.pop %v92
    %s94 = vtos %v93
    %v95 = vstv %s94
    %v96 = vmul.f32 %v90, %v95
    %98 = vset.pattern.permute.xlu0 0
    %99 = vperm.xlu0 %98, %v19
    %v100 = vpop.permute.xlu0 %99
    %v102 = vmul.f32 %v96, %v100
    %104 = vset.pattern.permute.xlu0 0
    %105 = vperm.xlu0 %104, %v20
    %v106 = vpop.permute.xlu0 %105
    %v108 = vadd.f32 %v102, %v106
    %109 = vst.msk [vmem:[#allocation2] sm:$0xff] %vm63, %v108
    %s110 = scalar_lea.vmem %s0, 4
    %v111 = vld [vmem:[%s110] sm:$0xf]
    %v112 = vmax.f32 %v111, 0.0
    %v113 = vlaneseq
    %v114 = vshrl.u32 %v113, 7
    %v115 = vsub.s32 0, %v114
    %v116 = vrot.slane %v112, %v115
    %v117 = vmul.f32 %v26, %v116
    %v118 = vlaneseq
    %v119 = vshrl.u32 %v118, 7
    %v120 = vsub.s32 1, %v119
    %v121 = vrot.slane %v112, %v120
    %v122 = vmul.f32 %v35, %v121
    %v123 = vadd.f32 %v117, %v122
    %v124 = vlaneseq
    %v125 = vshrl.u32 %v124, 7
    %v126 = vsub.s32 2, %v125
    %v127 = vrot.slane %v112, %v126
    %v128 = vmul.f32 %v45, %v127
    %v129 = vadd.f32 %v123, %v128
    %v130 = vlaneseq
    %v131 = vshrl.u32 %v130, 7
    %v132 = vsub.s32 3, %v131
    %v133 = vrot.slane %v112, %v132
    %v134 = vmul.f32 %v55, %v133
    %v135 = vadd.f32 %v129, %v134
    %v136 = vsel %vm63, %v135, 0.0
    %137 = vadd.xlane.f32.xlu0 %v136
    %v138 = vpop.xlane.xlu0 %137
    %v139 = vrot.slane %v138, 4
    %v140 = vadd.f32 %v138, %v139
    %v141 = vrot.slane %v140, 2
    %v142 = vadd.f32 %v140, %v141
    %v143 = vrot.slane %v142, 1
    %v144 = vadd.f32 %v142, %v143
    %s145 = vtos %v144
    %v146 = vmul.f32 %v135, %v135
    %v147 = vsel %vm63, %v146, 0.0
    %148 = vadd.xlane.f32.xlu0 %v147
    %v149 = vpop.xlane.xlu0 %148
    %v150 = vrot.slane %v149, 4
    %v151 = vadd.f32 %v149, %v150
    %v152 = vrot.slane %v151, 2
    %v153 = vadd.f32 %v151, %v152
    %v154 = vrot.slane %v153, 1
    %v155 = vadd.f32 %v153, %v154
    %s156 = vtos %v155
    %s157 = smul.f32 %s145, 0.001953125
    %s158 = smul.f32 %s156, 0.001953125
    %s159 = smul.f32 %s157, %s157
    %s160 = ssub.f32 %s158, %s159
    %v161 = vstv %s157
    %v162 = vsub.f32 %v135, %v161
    %s163 = sadd.f32 %s160, 1e-05
    %v164 = vstv %s163
    %v165 = vrsqrt.pop %v164
    %s166 = vtos %v165
    %v167 = vstv %s166
    %v168 = vmul.f32 %v162, %v167
    %v169 = vmul.f32 %v168, %v100
    %v170 = vadd.f32 %v169, %v106
    %s171 = scalar_lea.vmem [#allocation2], 8
    %172 = vst.msk [vmem:[%s171] sm:$0xff] %vm63, %v170
    // Predicated region
    $region18: #{tpu_custom_call.1} parent=1 // pred_check
      _
    $region19: #{tpu_custom_call.1} parent=1 // pred_check_branch
      %174 = sbr.rel (0) target = $region21
    $region20: #{tpu_custom_call.1} parent=1 // pred_region
      %s176 = ssub.s32 256, 256
      %177 = vsyncadd [#allocation3], %s176
      %s178 = sshll.u32 [#allocation2], 4
      %s179 = int_to_ptr.vmem [resolvable:$true] %s178
      %184 = dma.vmem_to_hbm [thread:$0]  %s179, 256, %s4, [#allocation3], 128, 128, 8
    $region21: #{tpu_custom_call.1} parent=1 // pred_fallthru
      _
    // Predicated region
    $region22: #{tpu_custom_call.1} parent=1 // pred_check
      _
    $region23: #{tpu_custom_call.1} parent=1 // pred_check_branch
      %186 = sbr.rel (0) target = $region25
    $region24: #{tpu_custom_call.1} parent=1 // pred_region
      %187 = dma.done [#allocation3], 256
    $region25: #{tpu_custom_call.1} parent=1 // pred_fallthru
      _
    %188 = vsyncpa [#allocation3], 1

</llo_original>
